<compile_context>
chip_gen: v7x
topology: tpu7x:2x2x1
jax: 0.10.0
libtpu: 0.0.40
codegen_flags: <defaults>
</compile_context>

<pallas_src>
import functools
import math

import jax
import jax.numpy as jnp
from jax.experimental import pallas as pl
from jax.experimental.pallas import tpu as pltpu

# ---------------- scaled-down PhoBERT config (roberta-base architecture) ----
VOCAB = 64
HIDDEN = 32
NUM_HEADS = 2
HEAD_DIM = HIDDEN // NUM_HEADS
INTERMEDIATE = 64
NUM_LAYERS = 2
MAX_POS = 32
PAD_ID = 1
LN_EPS = 1e-5

BATCH = 2
SEQ = 8


# ---------------------------- embedding LayerNorm kernel --------------------
def _ln_kernel(x_ref, g_ref, b_ref, o_ref, *, eps):
    h = x_ref[...]
    mu = jnp.mean(h, axis=-1, keepdims=True)
    var = jnp.mean(jnp.square(h - mu), axis=-1, keepdims=True)
    o_ref[...] = (h - mu) * jax.lax.rsqrt(var + eps) * g_ref[...] + b_ref[...]


def layer_norm(x, gamma, beta, eps=LN_EPS):
    """LayerNorm over the last (hidden) axis.  x:(M,H) gamma/beta:(1,H)."""
    M, H = x.shape
    return pl.pallas_call(
        functools.partial(_ln_kernel, eps=eps),
        out_shape=jax.ShapeDtypeStruct((M, H), jnp.float32),
        grid=(1,),
        in_specs=[
            pl.BlockSpec((M, H), lambda i: (0, 0)),
            pl.BlockSpec((1, H), lambda i: (0, 0)),
            pl.BlockSpec((1, H), lambda i: (0, 0)),
        ],
        out_specs=pl.BlockSpec((M, H), lambda i: (0, 0)),
    )(x, gamma, beta)


# ---------------------------- fused encoder kernel --------------------------
def _encoder_layer_kernel(
    x_ref, mask_ref,
    wqkv_ref, bqkv_ref, wo_ref, bo_ref, g1_ref, b1_ref,
    wi_ref, bi_ref, wf_ref, bf_ref, g2_ref, b2_ref,
    o_ref,
    *, num_heads, head_dim, seq, batch, eps, scale):
    """One transformer layer per grid step; o_ref carries the activation."""

    # Initialize the resident activation carry from the embedding output.
    @pl.when(pl.program_id(0) == 0)
    def _():
        o_ref[...] = x_ref[...]

    h = o_ref[...]                                   # (B*S, H), resident in VMEM
    H = num_heads * head_dim

    def ln(y, g, b):
        mu = jnp.mean(y, axis=-1, keepdims=True)
        var = jnp.mean(jnp.square(y - mu), axis=-1, keepdims=True)
        return (y - mu) * jax.lax.rsqrt(var + eps) * g + b

    # ---- fused QKV projection: one (B*S,H) x (H,3H) MXU matmul -------------
    qkv = jnp.dot(h, wqkv_ref[0], preferred_element_type=jnp.float32) + bqkv_ref[0]

    # ---- multi-head attention, all batches & heads in this grid step -------
    ctx_rows = []
    for b in range(batch):
        r0 = b * seq
        m_b = mask_ref[b]                            # (1, S) additive mask
        head_ctx = []
        for hh in range(num_heads):
            q = qkv[r0:r0 + seq, hh * head_dim:(hh + 1) * head_dim]
            k = qkv[r0:r0 + seq, H + hh * head_dim:H + (hh + 1) * head_dim]
            v = qkv[r0:r0 + seq, 2 * H + hh * head_dim:2 * H + (hh + 1) * head_dim]
            s = jax.lax.dot_general(
                q, k, (((1,), (1,)), ((), ())),
                preferred_element_type=jnp.float32) * scale
            s = s + m_b
            s = s - jnp.max(s, axis=-1, keepdims=True)
            p = jnp.exp(s)
            p = p * pl.reciprocal(jnp.sum(p, axis=-1, keepdims=True), approx=True)
            head_ctx.append(jnp.dot(p, v, preferred_element_type=jnp.float32))
        ctx_rows.append(jnp.concatenate(head_ctx, axis=-1))      # (S, H)
    ctx = jnp.concatenate(ctx_rows, axis=0)                      # (B*S, H)

    # ---- attention output projection + residual LayerNorm ------------------
    attn_out = jnp.dot(ctx, wo_ref[0], preferred_element_type=jnp.float32) + bo_ref[0]
    x1 = ln(attn_out + h, g1_ref[0], b1_ref[0])

    # ---- feed-forward + residual LayerNorm ----------------------------------
    # TODO(synk): HF PhoBERT uses exact (erf) GELU; tanh approximation is used
    # here for guaranteed Mosaic lowering (~1e-3 activation deviation).
    inter = jnp.dot(x1, wi_ref[0], preferred_element_type=jnp.float32) + bi_ref[0]
    inter = jax.nn.gelu(inter, approximate=True)
    ffn = jnp.dot(inter, wf_ref[0], preferred_element_type=jnp.float32) + bf_ref[0]
    o_ref[...] = ln(ffn + x1, g2_ref[0], b2_ref[0])


def encoder(params, x, add_mask, *, batch, seq):
    """Run all NUM_LAYERS transformer layers in a single pallas_call."""
    M, H = x.shape
    L, NH, DH, I = NUM_LAYERS, NUM_HEADS, HEAD_DIM, INTERMEDIATE
    scale = 1.0 / math.sqrt(DH)

    kernel = functools.partial(
        _encoder_layer_kernel,
        num_heads=NH, head_dim=DH, seq=seq, batch=batch, eps=LN_EPS, scale=scale)

    args = (
        x, add_mask,
        params["w_qkv"], params["b_qkv"],
        params["w_o"], params["b_o"],
        params["attn_ln_g"], params["attn_ln_b"],
        params["w_i"], params["b_i"],
        params["w_f"], params["b_f"],
        params["ffn_ln_g"], params["ffn_ln_b"],
    )

    def weight_spec(a):
        blk = (1,) + a.shape[1:]
        nz = len(blk) - 1
        return pl.BlockSpec(blk, lambda l, _nz=nz: (l,) + (0,) * _nz)

    in_specs = [
        pl.BlockSpec((M, H), lambda l: (0, 0)),                  # embedding output
        pl.BlockSpec(add_mask.shape, lambda l: (0, 0, 0)),       # additive mask
    ] + [weight_spec(a) for a in args[2:]]

    flops = L * (
        2 * M * H * 3 * H                 # QKV projection
        + 2 * batch * NH * 2 * seq * seq * DH  # scores + context matmuls
        + 2 * M * H * H                   # output projection
        + 2 * M * H * I + 2 * M * I * H   # FFN
    )
    bytes_accessed = sum(int(a.size) * 4 for a in args) + M * H * 4
    cost = pl.CostEstimate(
        flops=flops,
        transcendentals=L * (batch * NH * seq * seq + M * I),
        bytes_accessed=bytes_accessed,
    )

    return pl.pallas_call(
        kernel,
        out_shape=jax.ShapeDtypeStruct((M, H), jnp.float32),
        grid=(L,),
        in_specs=in_specs,
        out_specs=pl.BlockSpec((M, H), lambda l: (0, 0)),
        compiler_params=pltpu.CompilerParams(dimension_semantics=("arbitrary",)),
        cost_estimate=cost,
    )(*args)


# ---------------------------- parameters -------------------------------------
def init_params(key):
    keys = iter(jax.random.split(key, 8))

    def nrm(shape):
        return 0.02 * jax.random.normal(next(keys), shape, jnp.float32)

    L, H, I = NUM_LAYERS, HIDDEN, INTERMEDIATE
    return {
        "word_emb": nrm((VOCAB, H)),
        "pos_emb": nrm((MAX_POS, H)),
        "type_emb": nrm((1, H)),
        "emb_ln_g": jnp.ones((1, H), jnp.float32),
        "emb_ln_b": jnp.zeros((1, H), jnp.float32),
        # per-layer weights stacked along a leading layer axis
        "w_qkv": nrm((L, H, 3 * H)),
        "b_qkv": jnp.zeros((L, 1, 3 * H), jnp.float32),
        "w_o": nrm((L, H, H)),
        "b_o": jnp.zeros((L, 1, H), jnp.float32),
        "attn_ln_g": jnp.ones((L, 1, H), jnp.float32),
        "attn_ln_b": jnp.zeros((L, 1, H), jnp.float32),
        "w_i": nrm((L, H, I)),
        "b_i": jnp.zeros((L, 1, I), jnp.float32),
        "w_f": nrm((L, I, H)),
        "b_f": jnp.zeros((L, 1, H), jnp.float32),
        "ffn_ln_g": jnp.ones((L, 1, H), jnp.float32),
        "ffn_ln_b": jnp.zeros((L, 1, H), jnp.float32),
    }


# ---------------------------- forward pass ------------------------------------
def phobert_extractor(params, input_ids, attention_mask):
    B, S = input_ids.shape
    H = HIDDEN

    # --- embeddings (gather is plain-JAX glue) ---
    tok_mask = (input_ids != PAD_ID).astype(jnp.int32)
    position_ids = jnp.cumsum(tok_mask, axis=1) * tok_mask + PAD_ID  # RoBERTa style
    emb = (
        params["word_emb"][input_ids]
        + params["pos_emb"][position_ids]
        + params["type_emb"][0]
    )  # (B, S, H)
    x = layer_norm(emb.reshape(B * S, H), params["emb_ln_g"], params["emb_ln_b"])

    # --- extended additive attention mask, (B, 1, S), stays f32 ---
    ext = ((1.0 - attention_mask.astype(jnp.float32)) * -1e9)[:, None, :]

    # --- fused encoder: one pallas_call for all layers ---
    x = encoder(params, x, ext, batch=B, seq=S)

    # --- CLS token features: last_hidden_states[0][:, 0, :] ---
    return x.reshape(B, S, H)[:, 0, :]  # (B, H)


# ---------------------------- main ---------------------------------------------
if __name__ == "__main__":
    key = jax.random.PRNGKey(0)
    pkey, ikey = jax.random.split(key)
    params = init_params(pkey)

    # deterministic small inputs: batch=2, seq=8; second sequence padded at tail
    input_ids = jax.random.randint(ikey, (BATCH, SEQ), 2, VOCAB, dtype=jnp.int32)
    attention_mask = jnp.ones((BATCH, SEQ), jnp.int32)
    attention_mask = attention_mask.at[1, 5:].set(0)
    input_ids = jnp.where(attention_mask == 1, input_ids, PAD_ID)

    features = phobert_extractor(params, input_ids, attention_mask)
    features = jax.block_until_ready(features)
    assert features.shape == (BATCH, HIDDEN)
    assert bool(jnp.all(jnp.isfinite(features)))
    print("KERNEL_OK")
</pallas_src>

<mosaic_0001>
module attributes {stable_mosaic.version = 11 : i64} {
  func.func @_ln_kernel(%arg0: i32, %arg1: memref<16x32xf32, #tpu.memory_space<vmem>>, %arg2: memref<1x32xf32, #tpu.memory_space<vmem>>, %arg3: memref<1x32xf32, #tpu.memory_space<vmem>>, %arg4: memref<16x32xf32, #tpu.memory_space<vmem>>) attributes {dimension_semantics = [#tpu.dimension_semantics<arbitrary>], iteration_bounds = array<i64: 1>, scalar_prefetch = 0 : i64, scratch_operands = 0 : i64, tpu.core_type = #tpu.core_type<tc>, window_params = [{pipeline_mode = #tpu.pipeline_mode<synchronous>, transform_indices = @transform_0, window_bounds = array<i64: 16, 32>}, {pipeline_mode = #tpu.pipeline_mode<synchronous>, transform_indices = @transform_1, window_bounds = array<i64: 1, 32>}, {pipeline_mode = #tpu.pipeline_mode<synchronous>, transform_indices = @transform_2, window_bounds = array<i64: 1, 32>}, {pipeline_mode = #tpu.pipeline_mode<synchronous>, transform_indices = @transform_3, window_bounds = array<i64: 16, 32>}]} {
    %c0 = arith.constant 0 : index
    %c0_0 = arith.constant 0 : index
    %0 = vector.load %arg1[%c0, %c0_0] : memref<16x32xf32, #tpu.memory_space<vmem>>, vector<16x32xf32>
    %cst = arith.constant dense<0.000000e+00> : vector<16xf32>
    %1 = vector.multi_reduction <add>, %0, %cst [1] : vector<16x32xf32> to vector<16xf32>
    %2 = vector.shape_cast %1 : vector<16xf32> to vector<16x1xf32>
    %cst_1 = arith.constant 3.200000e+01 : f32
    %3 = vector.broadcast %cst_1 : f32 to vector<16x1xf32>
    %4 = arith.divf %2, %3 : vector<16x1xf32>
    %5 = vector.broadcast %4 : vector<16x1xf32> to vector<16x32xf32>
    %6 = arith.subf %0, %5 : vector<16x32xf32>
    %7 = arith.mulf %6, %6 : vector<16x32xf32>
    %cst_2 = arith.constant dense<0.000000e+00> : vector<16xf32>
    %8 = vector.multi_reduction <add>, %7, %cst_2 [1] : vector<16x32xf32> to vector<16xf32>
    %9 = vector.shape_cast %8 : vector<16xf32> to vector<16x1xf32>
    %cst_3 = arith.constant 3.200000e+01 : f32
    %10 = vector.broadcast %cst_3 : f32 to vector<16x1xf32>
    %11 = arith.divf %9, %10 : vector<16x1xf32>
    %12 = vector.broadcast %4 : vector<16x1xf32> to vector<16x32xf32>
    %13 = arith.subf %0, %12 : vector<16x32xf32>
    %cst_4 = arith.constant 9.99999974E-6 : f32
    %14 = vector.broadcast %cst_4 : f32 to vector<16x1xf32>
    %15 = arith.addf %11, %14 : vector<16x1xf32>
    %16 = math.rsqrt %15 : vector<16x1xf32>
    %17 = vector.broadcast %16 : vector<16x1xf32> to vector<16x32xf32>
    %18 = arith.mulf %13, %17 : vector<16x32xf32>
    %c0_5 = arith.constant 0 : index
    %c0_6 = arith.constant 0 : index
    %19 = vector.load %arg2[%c0_5, %c0_6] : memref<1x32xf32, #tpu.memory_space<vmem>>, vector<1x32xf32>
    %20 = vector.broadcast %19 : vector<1x32xf32> to vector<16x32xf32>
    %21 = arith.mulf %18, %20 : vector<16x32xf32>
    %c0_7 = arith.constant 0 : index
    %c0_8 = arith.constant 0 : index
    %22 = vector.load %arg3[%c0_7, %c0_8] : memref<1x32xf32, #tpu.memory_space<vmem>>, vector<1x32xf32>
    %23 = vector.broadcast %22 : vector<1x32xf32> to vector<16x32xf32>
    %24 = arith.addf %21, %23 : vector<16x32xf32>
    %c0_9 = arith.constant 0 : index
    %c0_10 = arith.constant 0 : index
    %25 = vector.load %arg4[%c0_9, %c0_10] : memref<16x32xf32, #tpu.memory_space<vmem>>, vector<16x32xf32>
    tpu.vector_store %arg4[%c0_9, %c0_10], %24 {strides = array<i32>} : memref<16x32xf32, #tpu.memory_space<vmem>>, vector<16x32xf32>,
    return
  }
  func.func @transform_0(%arg0: i32) -> (i32, i32) {
    %c0_i32 = arith.constant 0 : i32
    %c0_i32_0 = arith.constant 0 : i32
    %c0_i32_1 = arith.constant 0 : i32
    return %c0_i32, %c0_i32_0 : i32, i32
  }
  func.func @transform_1(%arg0: i32) -> (i32, i32) {
    %c0_i32 = arith.constant 0 : i32
    %c0_i32_0 = arith.constant 0 : i32
    %c0_i32_1 = arith.constant 0 : i32
    return %c0_i32, %c0_i32_0 : i32, i32
  }
  func.func @transform_2(%arg0: i32) -> (i32, i32) {
    %c0_i32 = arith.constant 0 : i32
    %c0_i32_0 = arith.constant 0 : i32
    %c0_i32_1 = arith.constant 0 : i32
    return %c0_i32, %c0_i32_0 : i32, i32
  }
  func.func @transform_3(%arg0: i32) -> (i32, i32) {
    %c0_i32 = arith.constant 0 : i32
    %c0_i32_0 = arith.constant 0 : i32
    %c0_i32_1 = arith.constant 0 : i32
    return %c0_i32, %c0_i32_0 : i32, i32
  }
}

</mosaic_0001>

<llo_original>
// kernel: tpu_custom_call.1
$region0: #{tpu_custom_call.1}
  #allocation0 [shape = 'u32[]', space=smem, size = 0x4, offset = 0x4, fixed_abs, tag = 'smem constant byte address 0x4 - core index']
  #allocation1 [shape = 'u32[144,128]{1,0:T(1,128)}', space=vmem, size = 0x12000, scoped, tag = 'internal scratch']
  %s0 = inlined_call_operand.hbm [shape: f32[16,32], index: 0, kind: input, shape index: {}]
  %s1 = inlined_call_operand.vmem [shape: f32[1,32], index: 1, kind: input, shape index: {}]
  %s2 = inlined_call_operand.vmem [shape: f32[1,32], index: 2, kind: input, shape index: {}]
  %s3 = inlined_call_operand.hbm [shape: f32[16,32], index: 3, kind: output, shape index: {}]
  %s4 = sld [smem:[#allocation0]]
  $region26: #{tpu_custom_call.1} parent=0
    _
  %s6 = ssub.s32 1, %s4
  %s7 = scalar_select 0, %s6, %s4
  $region1: #{tpu_custom_call.1} parent=0
    #allocation2 [shape = 'u8[8192]{0}', space=vmem, size = 0x2000, scoped, tag = 'input window, operand 0, single buffered']
    #allocation3 [shape = 's32[1]{0}', space=sflag, size = 0x4, scoped, tag = 'scoped memory for tpu_custom_call.1']
    #allocation4 [shape = 's32[1]{0}', space=sflag, size = 0x4, scoped, tag = 'scoped memory for tpu_custom_call.1']
    #allocation5 [shape = 'u8[8192]{0}', space=vmem, size = 0x2000, scoped, tag = 'output window, operand 0, single buffered']
    %8 = vsyncpa [#allocation3], 0
    %9 = vsyncpa [#allocation4], 0
    // Predicated region
    $region2: #{tpu_custom_call.1} parent=1 // pred_check
      _
    $region3: #{tpu_custom_call.1} parent=1 // pred_check_branch
      %11 = sbr.rel (0) target = $region5
    $region4: #{tpu_custom_call.1} parent=1 // pred_region
      %s13 = ssub.s32 256, 256
      %14 = vsyncadd [#allocation3], %s13
      %s15 = sshll.u32 [#allocation2], 4
      %s16 = int_to_ptr.vmem [resolvable:$true] %s15
      %21 = dma.hbm_to_vmem [thread:$0]  %s0, 256, %s16, [#allocation3], 128, 128, 8
    $region5: #{tpu_custom_call.1} parent=1 // pred_fallthru
      _
    // Predicated region
    $region6: #{tpu_custom_call.1} parent=1 // pred_check
      _
    $region7: #{tpu_custom_call.1} parent=1 // pred_check_branch
      %23 = sbr.rel (0) target = $region9
    $region8: #{tpu_custom_call.1} parent=1 // pred_region
      _
    $region9: #{tpu_custom_call.1} parent=1 // pred_fallthru
      _
    // Predicated region
    $region10: #{tpu_custom_call.1} parent=1 // pred_check
      _
    $region11: #{tpu_custom_call.1} parent=1 // pred_check_branch
      %25 = sbr.rel (0) target = $region13
    $region12: #{tpu_custom_call.1} parent=1 // pred_region
      _
    $region13: #{tpu_custom_call.1} parent=1 // pred_fallthru
      _
    // Predicated region
    $region14: #{tpu_custom_call.1} parent=1 // pred_check
      _
    $region15: #{tpu_custom_call.1} parent=1 // pred_check_branch
      %27 = sbr.rel (0) target = $region17
    $region16: #{tpu_custom_call.1} parent=1 // pred_region
      %28 = dma.done [#allocation3], 256
    $region17: #{tpu_custom_call.1} parent=1 // pred_fallthru
      _
    %v29 = vld [vmem:[#allocation2] sm:$0xff]
    %v30 = vld [vmem:[#allocation2 + $0x8] sm:$0xff]
    %vm31 = vcmask 261120
    %v32 = vsel %vm31, %v29, 0.0
    %33 = vadd.xlane.f32.xlu0 %v32
    %v34 = vpop.xlane.xlu0 %33
    %v35 = vsel %vm31, %v30, 0.0
    %36 = vadd.xlane.f32.xlu0 %v35
    %v37 = vpop.xlane.xlu0 %36
    %v38 = vrcp.pop 32.0
    %v39 = vmul.f32 %v34, %v38
    %v40 = vmul.f32 %v37, %v38
    %v41 = vsub.f32 %v29, %v39
    %v42 = vsub.f32 %v30, %v40
    %v43 = vmul.f32 %v41, %v41
    %v44 = vmul.f32 %v42, %v42
    %v45 = vsel %vm31, %v43, 0.0
    %46 = vadd.xlane.f32.xlu0 %v45
    %v47 = vpop.xlane.xlu0 %46
    %v48 = vsel %vm31, %v44, 0.0
    %49 = vadd.xlane.f32.xlu0 %v48
    %v50 = vpop.xlane.xlu0 %49
    %v51 = vmul.f32 %v47, %v38
    %v52 = vmul.f32 %v50, %v38
    %v53 = vadd.f32 %v51, 1e-05
    %v54 = vadd.f32 %v52, 1e-05
    %v55 = vrsqrt.pop %v53
    %v56 = vrsqrt.pop %v54
    %v57 = vmul.f32 %v41, %v55
    %v58 = vmul.f32 %v42, %v56
    %v59 = vld [vmem:[%s1] sm:$0x1]
    %v61 = vlaneseq
    %v62 = vshrl.u32 %v61, 7
    %v63 = vsub.s32 0, %v62
    %v64 = vrot.slane %v59, %v63
    %v66 = vmul.f32 %v57, %v64
    %v67 = vmul.f32 %v58, %v64
    %v68 = vld [vmem:[%s2] sm:$0x1]
    %v70 = vlaneseq
    %v71 = vshrl.u32 %v70, 7
    %v72 = vsub.s32 0, %v71
    %v73 = vrot.slane %v68, %v72
    %v75 = vadd.f32 %v66, %v73
    %v76 = vadd.f32 %v67, %v73
    %77 = vst.msk [vmem:[#allocation5] sm:$0xff] %vm31, %v75
    %78 = vst.msk [vmem:[#allocation5 + $0x8] sm:$0xff] %vm31, %v76
    // Predicated region
    $region18: #{tpu_custom_call.1} parent=1 // pred_check
      _
    $region19: #{tpu_custom_call.1} parent=1 // pred_check_branch
      %80 = sbr.rel (0) target = $region21
    $region20: #{tpu_custom_call.1} parent=1 // pred_region
      %s82 = ssub.s32 256, 256
      %83 = vsyncadd [#allocation4], %s82
      %s84 = sshll.u32 [#allocation5], 4
      %s85 = int_to_ptr.vmem [resolvable:$true] %s84
      %90 = dma.vmem_to_hbm [thread:$0]  %s85, 256, %s3, [#allocation4], 128, 128, 8
    $region21: #{tpu_custom_call.1} parent=1 // pred_fallthru
      _
    // Predicated region
    $region22: #{tpu_custom_call.1} parent=1 // pred_check
      _
    $region23: #{tpu_custom_call.1} parent=1 // pred_check_branch
      %92 = sbr.rel (0) target = $region25
    $region24: #{tpu_custom_call.1} parent=1 // pred_region
      %93 = dma.done [#allocation4], 256
    $region25: #{tpu_custom_call.1} parent=1 // pred_fallthru
      _
    %94 = vsyncpa [#allocation3], 1
    %95 = vsyncpa [#allocation4], 1

</llo_original>
